<compile_context>
chip_gen: v7x
topology: tpu7x:2x2x1
jax: 0.10.0
libtpu: 0.0.40
codegen_flags: <defaults>
</compile_context>

<pallas_src>
import math
import functools

import jax
import jax.numpy as jnp
from jax.experimental import pallas as pl
from jax.experimental.pallas import tpu as pltpu


def _round_up(x, m):
    return ((x + m - 1) // m) * m


def _patch_embed_kernel(p_ref, w_ref, b_ref, o_ref):
    # p_ref: (tm, K)   tile of flattened patches (compute dtype, e.g. bf16)
    # w_ref: (K, Eo)   full projection weight, VMEM-resident (compute dtype)
    # b_ref: (1, Eo)   bias (f32)
    # o_ref: (tm, Eo)  output tile
    acc = jnp.dot(p_ref[...], w_ref[...], preferred_element_type=jnp.float32)
    acc = acc + b_ref[...]                      # f32 bias add
    o_ref[...] = acc.astype(o_ref.dtype)


@functools.partial(jax.jit,
                   static_argnames=("patch_size", "tm", "compute_dtype"))
def patch_embed_pallas(x, w, b, *, patch_size, tm=512,
                       compute_dtype=jnp.bfloat16):
    """PatchEmbed forward.

    x: (B, C, H, W) image
    w: (E, C, P, P) conv weight (PyTorch Conv2d layout)
    b: (E,)         conv bias
    returns (B, num_patches, E) in x.dtype
    """
    B, C, H, W = x.shape
    P = patch_size
    E = w.shape[0]
    assert H % P == 0 and W % P == 0, "image size must match patch grid"
    gh, gw = H // P, W // P
    num_patches = gh * gw
    M = B * num_patches
    K = C * P * P
    out_dtype = x.dtype

    # ---- im2col in the wrapper, in the (narrow) compute dtype ----
    # Cast first so the XLA transpose moves half the bytes when bf16.
    # TODO(synk): fully fuse the patch extraction into the kernel (BlockSpec
    # over the metadata reshape (B,C,gh,P,gw,P) + in-VMEM rearrange) to remove
    # this remaining HBM round trip.
    xc = x.astype(compute_dtype)
    patches = (xc.reshape(B, C, gh, P, gw, P)
                 .transpose(0, 2, 4, 1, 3, 5)          # (B, gh, gw, C, P, P)
                 .reshape(M, K))
    w2d = w.astype(compute_dtype).reshape(E, K).T      # (K, E)  -- tiny
    b2d = b.astype(jnp.float32).reshape(1, E)

    # Only the OUTPUT minor dim needs lane (128) padding (unmasked stores).
    Eo = E if E % 128 == 0 else _round_up(E, 128)
    if Eo != E:
        w2d = jnp.pad(w2d, ((0, 0), (0, Eo - E)))
        b2d = jnp.pad(b2d, ((0, 0), (0, Eo - E)))

    # ---- row tile selection + VMEM budget (v7x has only 64 MiB per TC) ----
    cbytes = jnp.dtype(compute_dtype).itemsize
    obytes = jnp.dtype(out_dtype).itemsize
    sub = 8 if cbytes >= 4 else (16 if cbytes == 2 else 32)  # sublane packing
    tm_eff = _round_up(min(tm, _round_up(M, sub)), sub)

    def vmem_need(t):
        return (2 * t * K * cbytes          # patches tile (double buffered)
                + 2 * K * Eo * cbytes        # resident weight (2 bufs default)
                + 2 * 8 * Eo * 4             # bias (f32, sublane padded)
                + 2 * t * Eo * obytes)       # output tile (double buffered)

    VMEM_BUDGET = 40 * 1024 * 1024           # headroom below v7x's 64 MiB
    while vmem_need(tm_eff) > VMEM_BUDGET and tm_eff > 64:
        tm_eff = _round_up(max(tm_eff // 2, sub), sub)
    # TODO(synk): if the resident weight alone exceeds the budget (huge K*E on
    # v7x, e.g. P=32 with large E), tile the weight with an extra E grid axis.
    vmem_limit = int(vmem_need(tm_eff) + (8 << 20))

    grid = (pl.cdiv(M, tm_eff),)             # ragged last tile handled by Pallas

    cost = pl.CostEstimate(
        flops=2 * M * K * Eo,
        transcendentals=0,
        bytes_accessed=M * K * cbytes + K * Eo * cbytes + M * Eo * obytes,
    )

    out2d = pl.pallas_call(
        _patch_embed_kernel,
        out_shape=jax.ShapeDtypeStruct((M, Eo), out_dtype),
        grid_spec=pltpu.PrefetchScalarGridSpec(
            num_scalar_prefetch=0,
            grid=grid,
            in_specs=[
                pl.BlockSpec((tm_eff, K), lambda i: (i, 0)),  # K unpadded: full dim
                pl.BlockSpec((K, Eo), lambda i: (0, 0)),      # weight: resident
                pl.BlockSpec((1, Eo), lambda i: (0, 0)),      # bias: resident
            ],
            out_specs=pl.BlockSpec((tm_eff, Eo), lambda i: (i, 0)),
        ),
        compiler_params=pltpu.CompilerParams(
            dimension_semantics=("parallel",),
            vmem_limit_bytes=vmem_limit,
        ),
        cost_estimate=cost,
    )(patches, w2d, b2d)

    if Eo != E:
        out2d = out2d[:, :E]                 # only when E is not lane-aligned
    return out2d.reshape(B, num_patches, E)


def init_patch_embed_params(key, in_chans, embed_dim, patch_size,
                            dtype=jnp.float32):
    """Init mirroring nn.Conv2d's default uniform(-1/sqrt(fan_in), ...) range."""
    k1, k2 = jax.random.split(key)
    fan_in = in_chans * patch_size * patch_size
    bound = 1.0 / math.sqrt(fan_in)
    w = jax.random.uniform(k1, (embed_dim, in_chans, patch_size, patch_size),
                           minval=-bound, maxval=bound, dtype=dtype)
    b = jax.random.uniform(k2, (embed_dim,),
                           minval=-bound, maxval=bound, dtype=dtype)
    return w, b


def patch_embed_ref(x, w, b, patch_size):
    """Pure-JAX reference: strided conv + flatten(2).transpose(1,2)."""
    y = jax.lax.conv_general_dilated(
        x, w, window_strides=(patch_size, patch_size), padding="VALID",
        dimension_numbers=("NCHW", "OIHW", "NCHW"),
        precision=jax.lax.Precision.HIGHEST)
    y = y + b.reshape(1, -1, 1, 1)
    B, E, gh, gw = y.shape
    return y.reshape(B, E, gh * gw).transpose(0, 2, 1)


if __name__ == "__main__":
    key = jax.random.PRNGKey(0)
    kx, kp = jax.random.split(key)

    batch, in_chans, img_size, patch_size, embed_dim = 2, 4, 16, 4, 32
    x = jax.random.normal(kx, (batch, in_chans, img_size, img_size),
                          dtype=jnp.float32)
    w, b = init_patch_embed_params(kp, in_chans, embed_dim, patch_size)

    num_patches = (img_size // patch_size) ** 2
    y_ref = patch_embed_ref(x, w, b, patch_size)

    # 1) default bf16 MXU path; compare against a bf16-quantized-input
    #    reference (same math, f32 accumulation) with a tight tolerance.
    y = jax.block_until_ready(
        patch_embed_pallas(x, w, b, patch_size=patch_size))
    assert y.shape == (batch, num_patches, embed_dim)
    xq = x.astype(jnp.bfloat16).astype(jnp.float32)
    wq = w.astype(jnp.bfloat16).astype(jnp.float32)
    y_ref_q = patch_embed_ref(xq, wq, b, patch_size)
    err_q = float(jnp.max(jnp.abs(y.astype(jnp.float32) - y_ref_q)))
    assert jnp.allclose(y.astype(jnp.float32), y_ref_q,
                        atol=2e-3, rtol=2e-3), err_q
    # sanity vs the exact f32 reference (bf16 input quantization noise)
    assert jnp.allclose(y.astype(jnp.float32), y_ref,
                        atol=5e-2, rtol=5e-2), \
        float(jnp.max(jnp.abs(y.astype(jnp.float32) - y_ref)))

    # 2) f32 compute path with tm=24 (does not divide M=32) to exercise the
    #    cdiv grid / ragged last row-tile masked store; tight tolerance.
    y32 = jax.block_until_ready(
        patch_embed_pallas(x, w, b, patch_size=patch_size, tm=24,
                           compute_dtype=jnp.float32))
    err32 = float(jnp.max(jnp.abs(y32 - y_ref)))
    assert y32.shape == (batch, num_patches, embed_dim)
    assert jnp.allclose(y32, y_ref, atol=1e-4, rtol=1e-4), err32

    print("KERNEL_OK")
</pallas_src>

<mosaic_0001>
module attributes {stable_mosaic.version = 11 : i64} {
  func.func @_patch_embed_kernel(%arg0: i32, %arg1: memref<32x64xbf16, #tpu.memory_space<vmem>>, %arg2: memref<64x128xbf16, #tpu.memory_space<vmem>>, %arg3: memref<1x128xf32, #tpu.memory_space<vmem>>, %arg4: memref<32x128xf32, #tpu.memory_space<vmem>>) attributes {dimension_semantics = [#tpu.dimension_semantics<parallel>], iteration_bounds = array<i64: 1>, scalar_prefetch = 0 : i64, scratch_operands = 0 : i64, tpu.core_type = #tpu.core_type<tc>, window_params = [{transform_indices = @transform_0, window_bounds = array<i64: 32, 64>}, {pipeline_mode = #tpu.pipeline_mode<synchronous>, transform_indices = @transform_1, window_bounds = array<i64: 64, 128>}, {pipeline_mode = #tpu.pipeline_mode<synchronous>, transform_indices = @transform_2, window_bounds = array<i64: 1, 128>}, {transform_indices = @transform_3, window_bounds = array<i64: 32, 128>}]} {
    %c0 = arith.constant 0 : index
    %c0_0 = arith.constant 0 : index
    %0 = vector.load %arg1[%c0, %c0_0] : memref<32x64xbf16, #tpu.memory_space<vmem>>, vector<32x64xbf16>
    %c0_1 = arith.constant 0 : index
    %c0_2 = arith.constant 0 : index
    %1 = vector.load %arg2[%c0_1, %c0_2] : memref<64x128xbf16, #tpu.memory_space<vmem>>, vector<64x128xbf16>
    %cst = arith.constant dense<0.000000e+00> : vector<32x128xf32>
    %2 = tpu.matmul %0, %1, %cst {dimension_numbers = #tpu.dot_dimension_numbers<[1], [0], [0], [1], [0, 0, 1, 1], [], []>} : vector<32x64xbf16>, vector<64x128xbf16>, vector<32x128xf32> -> vector<32x128xf32>
    %c0_3 = arith.constant 0 : index
    %c0_4 = arith.constant 0 : index
    %3 = vector.load %arg3[%c0_3, %c0_4] : memref<1x128xf32, #tpu.memory_space<vmem>>, vector<1x128xf32>
    %4 = vector.broadcast %3 : vector<1x128xf32> to vector<32x128xf32>
    %5 = arith.addf %2, %4 : vector<32x128xf32>
    %c0_5 = arith.constant 0 : index
    %c0_6 = arith.constant 0 : index
    %6 = vector.load %arg4[%c0_5, %c0_6] : memref<32x128xf32, #tpu.memory_space<vmem>>, vector<32x128xf32>
    tpu.vector_store %arg4[%c0_5, %c0_6], %5 {strides = array<i32>} : memref<32x128xf32, #tpu.memory_space<vmem>>, vector<32x128xf32>,
    return
  }
  func.func @transform_0(%arg0: i32) -> (i32, i32) {
    %c0_i32 = arith.constant 0 : i32
    %c0_i32_0 = arith.constant 0 : i32
    return %arg0, %c0_i32 : i32, i32
  }
  func.func @transform_1(%arg0: i32) -> (i32, i32) {
    %c0_i32 = arith.constant 0 : i32
    %c0_i32_0 = arith.constant 0 : i32
    %c0_i32_1 = arith.constant 0 : i32
    return %c0_i32, %c0_i32_0 : i32, i32
  }
  func.func @transform_2(%arg0: i32) -> (i32, i32) {
    %c0_i32 = arith.constant 0 : i32
    %c0_i32_0 = arith.constant 0 : i32
    %c0_i32_1 = arith.constant 0 : i32
    return %c0_i32, %c0_i32_0 : i32, i32
  }
  func.func @transform_3(%arg0: i32) -> (i32, i32) {
    %c0_i32 = arith.constant 0 : i32
    %c0_i32_0 = arith.constant 0 : i32
    return %arg0, %c0_i32 : i32, i32
  }
}

</mosaic_0001>

<llo_original>
// kernel: patch_embed_pallas.1
$region0: #{patch_embed_pallas.1}
  #allocation0 [shape = 'u32[]', space=smem, size = 0x4, offset = 0x4, fixed_abs, tag = 'smem constant byte address 0x4 - core index']
  #allocation1 [shape = 'u32[144,128]{1,0:T(1,128)}', space=vmem, size = 0x12000, scoped, tag = 'internal scratch']
  %s0 = inlined_call_operand.vmem [shape: bf16[32,64], index: 0, kind: input, shape index: {}]
  %s1 = inlined_call_operand.vmem [shape: bf16[64,128], index: 1, kind: input, shape index: {}]
  %s2 = inlined_call_operand.vmem [shape: f32[1,128], index: 2, kind: input, shape index: {}]
  %s3 = inlined_call_operand.hbm [shape: f32[32,128], index: 3, kind: output, shape index: {}]
  %s4 = sld [smem:[#allocation0]]
  $region22: #{patch_embed_pallas.1} parent=0
    _
  %s6 = ssub.s32 1, %s4
  %s7 = scalar_select 0, %s6, %s4
  $region1: #{patch_embed_pallas.1} parent=0
    #allocation2 [shape = 'u8[16384]{0}', space=vmem, size = 0x4000, scoped, tag = 'output window, operand 0, single buffered']
    #allocation3 [shape = 's32[1]{0}', space=sflag, size = 0x4, scoped, tag = 'scoped memory for patch_embed_pallas.1']
    %8 = vsyncpa [#allocation3], 0
    // Predicated region
    $region2: #{patch_embed_pallas.1} parent=1 // pred_check
      _
    $region3: #{patch_embed_pallas.1} parent=1 // pred_check_branch
      %10 = sbr.rel (0) target = $region5
    $region4: #{patch_embed_pallas.1} parent=1 // pred_region
      _
    $region5: #{patch_embed_pallas.1} parent=1 // pred_fallthru
      _
    // Predicated region
    $region6: #{patch_embed_pallas.1} parent=1 // pred_check
      _
    $region7: #{patch_embed_pallas.1} parent=1 // pred_check_branch
      %12 = sbr.rel (0) target = $region9
    $region8: #{patch_embed_pallas.1} parent=1 // pred_region
      _
    $region9: #{patch_embed_pallas.1} parent=1 // pred_fallthru
      _
    // Predicated region
    $region10: #{patch_embed_pallas.1} parent=1 // pred_check
      _
    $region11: #{patch_embed_pallas.1} parent=1 // pred_check_branch
      %14 = sbr.rel (0) target = $region13
    $region12: #{patch_embed_pallas.1} parent=1 // pred_region
      _
    $region13: #{patch_embed_pallas.1} parent=1 // pred_fallthru
      _
    %v16 = vld [vmem:[%s0] sm:$0xf]
    %v17 = vld [vmem:[%s0 + $0x4] sm:$0xf]
    %v18 = vld [vmem:[%s0 + $0x8] sm:$0xf]
    %v19 = vld [vmem:[%s0 + $0xc] sm:$0xf]
    %v20 = vld [vmem:[%s1] sm:$0xf]
    %v21 = vld [vmem:[%s1 + $0x4] sm:$0xf]
    %v22 = vld [vmem:[%s1 + $0x8] sm:$0xf]
    %v23 = vld [vmem:[%s1 + $0xc] sm:$0xf]
    %v24 = vld [vmem:[%s1 + $0x10] sm:$0xf]
    %v25 = vld [vmem:[%s1 + $0x14] sm:$0xf]
    %v26 = vld [vmem:[%s1 + $0x18] sm:$0xf]
    %v27 = vld [vmem:[%s1 + $0x1c] sm:$0xf]
    %v28 = vld [vmem:[%s2] sm:$0x1]
    %v30 = vlaneseq
    %v31 = vshrl.u32 %v30, 7
    %v32 = vsub.s32 0, %v31
    %v33 = vrot.slane %v28, %v32
    %v39 = vunpack.c.l.b16 %v16
    %v40 = vunpack.c.l.b16 %v17
    %v41 = vunpack.c.l.b16 %v18
    %v42 = vunpack.c.l.b16 %v19
    %v43 = vpack.c.b16 %v40, %v39
    %v44 = vpack.c.b16 %v42, %v41
    %v53 = vunpack.c.l.b16 %v20
    %v54 = vunpack.c.l.b16 %v21
    %v55 = vunpack.c.l.b16 %v22
    %v56 = vunpack.c.l.b16 %v23
    %v57 = vunpack.c.l.b16 %v24
    %v58 = vunpack.c.l.b16 %v25
    %v59 = vunpack.c.l.b16 %v26
    %v60 = vunpack.c.l.b16 %v27
    %v61 = vpack.c.b16 %v54, %v53
    %v62 = vpack.c.b16 %v56, %v55
    %v63 = vpack.c.b16 %v58, %v57
    %v64 = vpack.c.b16 %v60, %v59
    %vm69 = vcmask 523264
    %v71 = vsel %vm69, %v43, 0
    %v74 = vsel %vm69, %v44, 0
    %76 = vmatprep.subr.bf16.mxu0 0
    %77 = vmatpush1.bf16.msra.mxu0 %v61
    %78 = vmatprep.subr.bf16.mxu0 0
    %79 = vmatpush1.bf16.msra.mxu0 %v62
    %80 = vmatprep.subr.bf16.mxu0 0
    %81 = vmatpush1.bf16.msra.mxu0 %v63
    %82 = vmatprep.subr.bf16.mxu0 0
    %83 = vmatpush1.bf16.msra.mxu0 %v64
    %84 = vmatprep.subr.bf16.mxu0 0
    %85 = vmatpush1.bf16.msra.mxu0 0
    %86 = vmatprep.subr.bf16.mxu0 0
    %87 = vmatpush1.bf16.msra.mxu0 0
    %88 = vmatprep.subr.bf16.mxu0 0
    %89 = vmatpush1.bf16.msra.mxu0 0
    %90 = vmatprep.subr.bf16.mxu0 0
    %91 = vmatpush1.bf16.msra.mxu0 0
    %92 = vmatprep.subr.bf16.mxu0 0
    %93 = vmatpush1.bf16.msra.mxu0 0
    %94 = vmatprep.subr.bf16.mxu0 0
    %95 = vmatpush1.bf16.msra.mxu0 0
    %96 = vmatprep.subr.bf16.mxu0 0
    %97 = vmatpush1.bf16.msra.mxu0 0
    %98 = vmatprep.subr.bf16.mxu0 0
    %99 = vmatpush1.bf16.msra.mxu0 0
    %100 = vmatprep.subr.bf16.mxu0 0
    %101 = vmatpush1.bf16.msra.mxu0 0
    %102 = vmatprep.subr.bf16.mxu0 0
    %103 = vmatpush1.bf16.msra.mxu0 0
    %104 = vmatprep.subr.bf16.mxu0 0
    %105 = vmatpush1.bf16.msra.mxu0 0
    %106 = vmatprep.subr.bf16.mxu0 0
    %107 = vmatpush1.bf16.msra.mxu0 0
    %108 = vmatprep.mubr.bf16.mxu0 0
    %109 = vmatmul.mubr.bf16.gmra.mrb[0].mxu0 %v71
    %v110 = vpop.f32.mrb[0].mxu0
    %v111 = vadd.f32 %v33, %v110
    %v112 = vpop.f32.mrb[0].mxu0
    %v113 = vpop.f32.mrb[0].mxu0
    %v114 = vadd.f32 %v33, %v113
    %v115 = vpop.f32.mrb[0].mxu0
    %116 = vmatprep.mubr.bf16.mxu0 0
    %117 = vmatmul.mubr.bf16.gmra.mrb[0].mxu0 %v74
    %v118 = vpop.f32.mrb[0].mxu0
    %v119 = vadd.f32 %v33, %v118
    %v120 = vpop.f32.mrb[0].mxu0
    %v121 = vpop.f32.mrb[0].mxu0
    %v122 = vadd.f32 %v33, %v121
    %v123 = vpop.f32.mrb[0].mxu0
    %124 = vdwg.mxu0
    %125 = vst [vmem:[#allocation2] sm:$0xff] %v111
    %126 = vst [vmem:[#allocation2 + $0x8] sm:$0xff] %v114
    %127 = vst [vmem:[#allocation2 + $0x10] sm:$0xff] %v119
    %128 = vst [vmem:[#allocation2 + $0x18] sm:$0xff] %v122
    // Predicated region
    $region14: #{patch_embed_pallas.1} parent=1 // pred_check
      _
    $region15: #{patch_embed_pallas.1} parent=1 // pred_check_branch
      %130 = sbr.rel (0) target = $region17
    $region16: #{patch_embed_pallas.1} parent=1 // pred_region
      %s132 = ssub.s32 512, 512
      %133 = vsyncadd [#allocation3], %s132
      %s134 = sshll.u32 [#allocation2], 4
      %s135 = int_to_ptr.vmem [resolvable:$true] %s134
      %140 = dma.vmem_to_hbm [thread:$0]  %s135, 512, %s3, [#allocation3], 128, 128, 8
    $region17: #{patch_embed_pallas.1} parent=1 // pred_fallthru
      _
    // Predicated region
    $region18: #{patch_embed_pallas.1} parent=1 // pred_check
      _
    $region19: #{patch_embed_pallas.1} parent=1 // pred_check_branch
      %142 = sbr.rel (0) target = $region21
    $region20: #{patch_embed_pallas.1} parent=1 // pred_region
      %143 = dma.done [#allocation3], 512
    $region21: #{patch_embed_pallas.1} parent=1 // pred_fallthru
      _
    %144 = vsyncpa [#allocation3], 1

</llo_original>
